<compile_context>
chip_gen: v6e
topology: v6e:2x2x1
jax: 0.10.0
libtpu: 0.0.40
codegen_flags: <defaults>
</compile_context>

<pallas_src>
import math
from functools import partial

import jax
import jax.numpy as jnp
from jax import lax
from jax.experimental import pallas as pl
from jax.experimental.pallas import tpu as pltpu


# ---------------------------------------------------------------------------
# Kernels
# ---------------------------------------------------------------------------

def _conv1x1_kernel(x_ref, w_ref, o_ref):
    """Exact-width output tile (Cout already a multiple of 128, or fallback)."""
    x = x_ref[0]          # (Cin, tp)  -- pixels on lanes -> dense vector loads
    w = w_ref[...]        # (Cin, Cout) -- resident weight (constant index_map)
    # Contract Cin (lhs dim 0 vs rhs dim 0) -> (tp, Cout), f32 accumulation.
    # NOTE(review item 7): this is a transposed-LHS matmul (contraction on the
    # sublane dim of x).  For compute-bound shapes (Cin, Cout >= 128) check the
    # bundle dump for a per-tile vxpose; if present, switch to the native
    # orientation (Cout, tp) = dot(W^T, x) plus one relayout.  For the
    # small-channel memory-bound cases it is hidden under the DMA pipeline.
    y = lax.dot_general(
        x, w,
        dimension_numbers=(((0,), (0,)), ((), ())),
        preferred_element_type=jnp.float32,
    )
    o_ref[0] = y.astype(o_ref.dtype)


def _conv1x1_fold_kernel(x_ref, w_ref, o_ref, *, fold):
    """Lane-dense output tile: `fold` consecutive pixels packed into the last
    (lane) dim so the store is an unmasked full-width slab (review item 1)."""
    x = x_ref[0]          # (Cin, tp)
    w = w_ref[...]        # (Cin, Cout)
    y = lax.dot_general(
        x, w,
        dimension_numbers=(((0,), (0,)), ((), ())),
        preferred_element_type=jnp.float32,
    )                      # (tp, Cout)
    tp, cout = y.shape
    # Row-major in-VMEM relayout (tp, Cout) -> (tp/fold, fold*Cout): this is
    # byte-identical to the NHWC layout, so HBM bytes are unchanged while the
    # VMEM output buffer loses its lane padding and the writeback DMA reads a
    # dense tile.
    o_ref[0] = y.reshape(tp // fold, fold * cout).astype(o_ref.dtype)


# ---------------------------------------------------------------------------
# Tile / budget selection
# ---------------------------------------------------------------------------

def _round_up(x, m):
    return ((x + m - 1) // m) * m


def _sublane_multiple(dtype):
    # second-to-last dim tiling multiple: 8 (4-byte), 16 (2-byte), 32 (1-byte)
    return max(8, 32 // max(1, jnp.dtype(dtype).itemsize))


def _vmem_budgets():
    """(double-buffered I/O budget, vmem_limit_bytes) per TPU generation.

    v5e/v6e have 128 MiB physical VMEM -> large blocks; v7x (64 MiB physical /
    32 MiB scoped) and unknown targets get the conservative setting.
    (review items 3 & 4)
    """
    vmem_capacity = None
    try:
        info = pltpu.get_tpu_info()
        vmem_capacity = getattr(info, "vmem_capacity_bytes", None)
    except Exception:
        vmem_capacity = None
    if vmem_capacity is not None and vmem_capacity >= 100 * 1024 * 1024:
        return 40 * 1024 * 1024, 64 * 1024 * 1024      # v5e / v6e
    return 12 * 1024 * 1024, 32 * 1024 * 1024          # v7x-class or unknown


def _pick_pixel_tile(P, Cin, Cout, fold, dtype, io_budget, n_batch):
    """Largest pixel tile whose *padded* double-buffered VMEM footprint fits
    io_budget, then shrunk (only if useful) so the grid has >= 8 steps
    (>= 2 per v7x TensorCore plus pipeline overlap).  (review items 2, 5, 6)
    """
    isz = jnp.dtype(dtype).itemsize
    sub = _sublane_multiple(dtype)
    align_px = math.lcm(128, 8 * fold) if fold > 1 else 128

    # Real per-pixel VMEM bytes including layout padding.
    in_pp = _round_up(Cin, sub) * isz                      # (Cin, tp): Cin on sublanes
    if fold > 1:
        out_pp = Cout * isz                                # lane-dense folded tile
    else:
        out_pp = _round_up(Cout, 128) * isz                # lane-padded exact-width tile
    w_bytes = 2 * _round_up(Cin, sub) * _round_up(Cout, 128) * isz   # resident weight

    budget = max(io_budget - w_bytes, 2 * align_px * (in_pp + out_pp))
    tp = budget // (2 * (in_pp + out_pp))                  # double-buffered in + out
    tp = max(align_px, (tp // align_px) * align_px)
    if tp >= P:
        tp = P                                             # full pixel axis per step

    # Grid-depth guard (no fixed pixel cap): only shrink if it buys extra steps.
    steps = n_batch * pl.cdiv(P, tp)
    if steps < 8:
        want_per_batch = pl.cdiv(8, n_batch)
        tp_guard = _round_up(pl.cdiv(P, want_per_batch), align_px)
        if tp_guard < tp:
            tp = max(align_px, tp_guard)
    return tp


# ---------------------------------------------------------------------------
# pallas_call builder + public wrapper
# ---------------------------------------------------------------------------

def _run_conv1x1(x_flat, wt, fold, io_budget, vmem_limit):
    N, Cin, P = x_flat.shape
    Cout = wt.shape[1]
    dt = x_flat.dtype
    tp = _pick_pixel_tile(P, Cin, Cout, fold, dt, io_budget, N)

    if fold > 1:
        tpf, Pf = tp // fold, P // fold
        out_shape = jax.ShapeDtypeStruct((N, Pf, fold * Cout), dt)
        out_spec = pl.BlockSpec((1, tpf, fold * Cout), lambda n, p: (n, p, 0))
        grid = (N, pl.cdiv(Pf, tpf))
        kernel = partial(_conv1x1_fold_kernel, fold=fold)
    else:
        out_shape = jax.ShapeDtypeStruct((N, P, Cout), dt)
        out_spec = pl.BlockSpec((1, tp, Cout), lambda n, p: (n, p, 0))
        grid = (N, pl.cdiv(P, tp))
        kernel = _conv1x1_kernel

    return pl.pallas_call(
        kernel,
        out_shape=out_shape,
        grid=grid,
        in_specs=[
            # (1, Cin, tp): pixels on the lane dim -> dense HBM->VMEM loads.
            pl.BlockSpec((1, Cin, tp), lambda n, p: (n, 0, p)),
            # Whole weight, constant block index -> copied to VMEM once.
            pl.BlockSpec((Cin, Cout), lambda n, p: (0, 0)),
        ],
        out_specs=out_spec,
        compiler_params=pltpu.CompilerParams(
            dimension_semantics=("parallel", "parallel"),
            vmem_limit_bytes=vmem_limit,
        ),
        cost_estimate=pl.CostEstimate(
            flops=2 * N * P * Cin * Cout,
            transcendentals=0,
            bytes_accessed=int(
                (N * Cin * P + Cin * Cout + N * P * Cout) * dt.itemsize),
        ),
    )(x_flat, wt)


_FOLD_LOWERABLE = None   # lazily probed once per process


def conv1x1_forward(x_nchw, weight, stride=1):
    """Equivalent of Conv1x1(in,out,stride).forward(x): conv1x1 (no bias), NHWC out.

    Args:
      x_nchw: (N, Cin, H, W) input (NCHW, as in PyTorch).
      weight: (Cout, Cin) or (Cout, Cin, 1, 1) conv kernel.
      stride: spatial stride of the 1x1 conv.
    Returns:
      (N, Ho, Wo, Cout) output, matching conv(x).permute(0, 2, 3, 1).
    """
    global _FOLD_LOWERABLE

    if stride != 1:
        # TODO(synk): fold the stride into the kernel (strided index_map / read)
        # instead of this extra (small) XLA gather pass.
        x_nchw = x_nchw[:, :, ::stride, ::stride]

    N, Cin, H, W = x_nchw.shape
    w2 = weight.reshape(weight.shape[0], -1)               # (Cout, Cin)
    Cout = w2.shape[0]
    # Transpose once + cast to the activation dtype (review item 9): narrow-dtype
    # MXU path and half-size resident weight when activations are bf16.
    wt = jnp.transpose(w2, (1, 0)).astype(x_nchw.dtype)    # (Cin, Cout)

    P = H * W
    x_flat = x_nchw.reshape(N, Cin, P)                     # metadata-only collapse

    io_budget, vmem_limit = _vmem_budgets()

    # Lane-dense fold factor: smallest f with (f * Cout) % 128 == 0.
    fold = 128 // math.gcd(Cout, 128)
    use_fold = (fold > 1) and (P % fold == 0) and (_FOLD_LOWERABLE is not False)

    if use_fold:
        try:
            out = _run_conv1x1(x_flat, wt, fold, io_budget, vmem_limit)
            if _FOLD_LOWERABLE is None:
                jax.block_until_ready(out)                 # surface compile errors here
            _FOLD_LOWERABLE = True
            # (N, P/f, f*Cout) is byte-identical to NHWC -> contiguous reshape.
            return out.reshape(N, H, W, Cout)
        except Exception:
            # This Mosaic build cannot lower the in-kernel (tp,Cout)->(tp/f,f*Cout)
            # relayout; fall back to the exact-width (masked-store) path.  The
            # probe only works when this wrapper is called eagerly.
            _FOLD_LOWERABLE = False

    out = _run_conv1x1(x_flat, wt, 1, io_budget, vmem_limit)
    return out.reshape(N, H, W, Cout)


if __name__ == "__main__":
    # Small, deterministic example consistent with the module.
    N, Cin, H, W = 2, 4, 16, 16
    Cout = 8
    stride = 1

    key = jax.random.PRNGKey(0)
    kx, kw = jax.random.split(key)

    x = jax.random.normal(kx, (N, Cin, H, W), dtype=jnp.float32)
    weight = jax.random.normal(kw, (Cout, Cin, 1, 1), dtype=jnp.float32) * 0.1

    out = conv1x1_forward(x, weight, stride=stride)
    out = jax.block_until_ready(out)

    # Reference in plain JAX (channel contraction, NHWC output).
    ref = jnp.einsum("nchw,oc->nhwo", x, weight.reshape(Cout, Cin))
    assert out.shape == (N, H, W, Cout)
    assert jnp.allclose(out, ref, atol=1e-5, rtol=1e-5)

    print("KERNEL_OK")
</pallas_src>

<mosaic_0001>
module attributes {stable_mosaic.version = 11 : i64} {
  func.func @_conv1x1_fold_kernel(%arg0: i32, %arg1: i32, %arg2: memref<1x4x128xf32, #tpu.memory_space<vmem>>, %arg3: memref<4x8xf32, #tpu.memory_space<vmem>>, %arg4: memref<1x8x128xf32, #tpu.memory_space<vmem>>) attributes {dimension_semantics = [#tpu.dimension_semantics<parallel>, #tpu.dimension_semantics<parallel>], iteration_bounds = array<i64: 2, 2>, scalar_prefetch = 0 : i64, scratch_operands = 0 : i64, tpu.core_type = #tpu.core_type<tc>, window_params = [{transform_indices = @transform_0, window_bounds = array<i64: 1, 4, 128>}, {pipeline_mode = #tpu.pipeline_mode<synchronous>, transform_indices = @transform_1, window_bounds = array<i64: 4, 8>}, {transform_indices = @transform_2, window_bounds = array<i64: 1, 8, 128>}]} {
    %c0 = arith.constant 0 : index
    %c0_0 = arith.constant 0 : index
    %c0_1 = arith.constant 0 : index
    %0 = vector.load %arg2[%c0, %c0_0, %c0_1] : memref<1x4x128xf32, #tpu.memory_space<vmem>>, vector<1x4x128xf32>
    %1 = vector.shape_cast %0 : vector<1x4x128xf32> to vector<4x128xf32>
    %c0_2 = arith.constant 0 : index
    %c0_3 = arith.constant 0 : index
    %2 = vector.load %arg3[%c0_2, %c0_3] : memref<4x8xf32, #tpu.memory_space<vmem>>, vector<4x8xf32>
    %cst = arith.constant dense<0.000000e+00> : vector<128x8xf32>
    %3 = tpu.matmul %1, %2, %cst {dimension_numbers = #tpu.dot_dimension_numbers<[0], [0], [1], [1], [0, 1, 1, 1], [], []>} : vector<4x128xf32>, vector<4x8xf32>, vector<128x8xf32> -> vector<128x8xf32>
    %4 = vector.shape_cast %3 : vector<128x8xf32> to vector<8x128xf32>
    %c0_4 = arith.constant 0 : index
    %c0_5 = arith.constant 0 : index
    %c0_6 = arith.constant 0 : index
    %5 = vector.load %arg4[%c0_4, %c0_5, %c0_6] : memref<1x8x128xf32, #tpu.memory_space<vmem>>, vector<1x8x128xf32>
    %6 = vector.shape_cast %5 : vector<1x8x128xf32> to vector<8x128xf32>
    %7 = vector.shape_cast %4 : vector<8x128xf32> to vector<1x8x128xf32>
    tpu.vector_store %arg4[%c0_4, %c0_5, %c0_6], %7 {strides = array<i32>} : memref<1x8x128xf32, #tpu.memory_space<vmem>>, vector<1x8x128xf32>,
    return
  }
  func.func @transform_0(%arg0: i32, %arg1: i32) -> (i32, i32, i32) {
    %c0_i32 = arith.constant 0 : i32
    %c0_i32_0 = arith.constant 0 : i32
    return %arg0, %c0_i32, %arg1 : i32, i32, i32
  }
  func.func @transform_1(%arg0: i32, %arg1: i32) -> (i32, i32) {
    %c0_i32 = arith.constant 0 : i32
    %c0_i32_0 = arith.constant 0 : i32
    %c0_i32_1 = arith.constant 0 : i32
    return %c0_i32, %c0_i32_0 : i32, i32
  }
  func.func @transform_2(%arg0: i32, %arg1: i32) -> (i32, i32, i32) {
    %c0_i32 = arith.constant 0 : i32
    %c0_i32_0 = arith.constant 0 : i32
    return %arg0, %arg1, %c0_i32 : i32, i32, i32
  }
}

module attributes {stable_mosaic.version = 11 : i64} {
  func.func @_conv1x1_kernel(%arg0: i32, %arg1: i32, %arg2: memref<1x4x128xf32, #tpu.memory_space<vmem>>, %arg3: memref<4x8xf32, #tpu.memory_space<vmem>>, %arg4: memref<1x128x8xf32, #tpu.memory_space<vmem>>) attributes {dimension_semantics = [#tpu.dimension_semantics<parallel>, #tpu.dimension_semantics<parallel>], iteration_bounds = array<i64: 2, 2>, scalar_prefetch = 0 : i64, scratch_operands = 0 : i64, tpu.core_type = #tpu.core_type<tc>, window_params = [{transform_indices = @transform_0, window_bounds = array<i64: 1, 4, 128>}, {pipeline_mode = #tpu.pipeline_mode<synchronous>, transform_indices = @transform_1, window_bounds = array<i64: 4, 8>}, {transform_indices = @transform_2, window_bounds = array<i64: 1, 128, 8>}]} {
    %c0 = arith.constant 0 : index
    %c0_0 = arith.constant 0 : index
    %c0_1 = arith.constant 0 : index
    %0 = vector.load %arg2[%c0, %c0_0, %c0_1] : memref<1x4x128xf32, #tpu.memory_space<vmem>>, vector<1x4x128xf32>
    %1 = vector.shape_cast %0 : vector<1x4x128xf32> to vector<4x128xf32>
    %c0_2 = arith.constant 0 : index
    %c0_3 = arith.constant 0 : index
    %2 = vector.load %arg3[%c0_2, %c0_3] : memref<4x8xf32, #tpu.memory_space<vmem>>, vector<4x8xf32>
    %cst = arith.constant dense<0.000000e+00> : vector<128x8xf32>
    %3 = tpu.matmul %1, %2, %cst {dimension_numbers = #tpu.dot_dimension_numbers<[0], [0], [1], [1], [0, 1, 1, 1], [], []>} : vector<4x128xf32>, vector<4x8xf32>, vector<128x8xf32> -> vector<128x8xf32>
    %c0_4 = arith.constant 0 : index
    %c0_5 = arith.constant 0 : index
    %c0_6 = arith.constant 0 : index
    %4 = vector.load %arg4[%c0_4, %c0_5, %c0_6] : memref<1x128x8xf32, #tpu.memory_space<vmem>>, vector<1x128x8xf32>
    %5 = vector.shape_cast %4 : vector<1x128x8xf32> to vector<128x8xf32>
    %6 = vector.shape_cast %3 : vector<128x8xf32> to vector<1x128x8xf32>
    tpu.vector_store %arg4[%c0_4, %c0_5, %c0_6], %6 {strides = array<i32>} : memref<1x128x8xf32, #tpu.memory_space<vmem>>, vector<1x128x8xf32>,
    return
  }
  func.func @transform_0(%arg0: i32, %arg1: i32) -> (i32, i32, i32) {
    %c0_i32 = arith.constant 0 : i32
    %c0_i32_0 = arith.constant 0 : i32
    return %arg0, %c0_i32, %arg1 : i32, i32, i32
  }
  func.func @transform_1(%arg0: i32, %arg1: i32) -> (i32, i32) {
    %c0_i32 = arith.constant 0 : i32
    %c0_i32_0 = arith.constant 0 : i32
    %c0_i32_1 = arith.constant 0 : i32
    return %c0_i32, %c0_i32_0 : i32, i32
  }
  func.func @transform_2(%arg0: i32, %arg1: i32) -> (i32, i32, i32) {
    %c0_i32 = arith.constant 0 : i32
    %c0_i32_0 = arith.constant 0 : i32
    return %arg0, %arg1, %c0_i32 : i32, i32, i32
  }
}

</mosaic_0001>

<llo_original>
// kernel: tpu_custom_call.1
$region0: #{tpu_custom_call.1}
  #allocation0 [shape = 'u32[]', space=smem, size = 0x4, offset = 0x4, fixed_abs, tag = 'smem constant byte address 0x4 - core index']
  #allocation1 [shape = 'u32[144,128]{1,0:T(1,128)}', space=vmem, size = 0x12000, scoped, tag = 'internal scratch']
  %s0 = inlined_call_operand.hbm [shape: f32[2,4,256], index: 0, kind: input, shape index: {}]
  %s1 = inlined_call_operand.hbm [shape: f32[4,8], index: 1, kind: input, shape index: {}]
  %s2 = inlined_call_operand.vmem [shape: f32[2,256,8], index: 2, kind: output, shape index: {}]
  %s3 = sld [smem:[#allocation0]]
  $region49: #{tpu_custom_call.1} parent=0
    _
  %s5 = ssub.s32 1, %s3
  %s6 = scalar_select 0, %s5, %s3
  $region1: #{tpu_custom_call.1} parent=0
    #allocation2 [shape = 'u8[4096]{0}', space=vmem, size = 0x1000, scoped, tag = 'input window, operand 0']
    #allocation3 [shape = 's32[2]{0}', space=sflag, size = 0x8, scoped, tag = 'scoped memory for tpu_custom_call.1']
    #allocation4 [shape = 'u8[2048]{0}', space=vmem, size = 0x800, scoped, tag = 'input window, operand 1, single buffered']
    #allocation5 [shape = 's32[1]{0}', space=sflag, size = 0x4, scoped, tag = 'scoped memory for tpu_custom_call.1']
    %7 = vsyncpa [#allocation3], 0
    %s8 = scalar_lea.sflag [#allocation3], 1
    %9 = vsyncpa %s8, 0
    %10 = vsyncpa [#allocation5], 0
    loop: start=0, step=1, limit=6
    $region2: #{tpu_custom_call.1} parent=1 // loop_pre_header
      _
    $region3: #{tpu_custom_call.1} parent=1 // loop_header
      %s12 = sphi 0, %s16
      %p13 = scmp.ge.s32.totalorder %s12, 6
      %s19 = sphi 0, %s31
      %s20 = sphi 0, %s27
      %s21 = sphi 0, %s19
      %s22 = sphi 0, %s20
      %s23 = sphi 0, %s21
      %s24 = sphi 0, %s22
      %s36 = sphi 0, %s38
      %s39 = sphi 0, %s36
      %s40 = sphi 0, %s39
      %s56 = sphi 0, %s40
      %s60 = sphi 0, %s60
      %s62 = sphi 0, %s60
      %s63 = sphi 0, %s62
      %s77 = sphi 0, %s63
      %s85 = sphi 0, %s87
      %s88 = sphi 0, %s85
      %s89 = sphi 0, %s88
      %s105 = sphi 0, %s89
    $region4: #{tpu_custom_call.1} parent=1 // loop_header_branch
      %15 = sbr.rel (%p13) target = $region8
    $region5: #{tpu_custom_call.1} parent=1 // loop_body
      %s17 = ssub.s32 %s12, 1
      %s18 = ssub.s32 %s12, 2
      %s25 = sadd.s32 1, %s20
      %p26 = scmp.ge.s32.totalorder %s25, 2
      %s27 = scalar_select %p26, 0, %s25
      %s28 = sadd.s32 1, %s19
      %s29 = scalar_select %p26, %s28, %s19
      %p30 = scmp.ge.s32.totalorder %s29, 2
      %s31 = scalar_select %p30, 0, %s29
      %s32 = ssub.s32 %s19, %s31
      %s33 = ssub.s32 %s20, %s27
      %s34 = sor.u32 %s32, %s33
      %p35 = scmp.eq.s32.totalorder %s34, 0
      %s37 = sadd.s32 %s36, 1
      %s38 = scalar_select %p35, %s36, %s37
      %p41 = pneg %p35
      %p42 = scmp.eq.s32.totalorder %s12, 3
      %p43 = por %p41, %p42
      %p44 = scmp.ne.s32.totalorder %s36, %s39
      %p45 = scmp.eq.s32.totalorder %s12, 0
      %p46 = por %p44, %p45
      %p47 = scmp.ne.s32.totalorder %s36, %s39
      %p48 = scmp.eq.s32.totalorder %s17, 3
      %p49 = por %p47, %p48
      %p50 = scmp.ne.s32.totalorder %s39, %s40
      %p51 = scmp.eq.s32.totalorder %s17, 0
      %p52 = por %p50, %p51
      %p53 = scmp.ne.s32.totalorder %s39, %s40
      %p54 = scmp.eq.s32.totalorder %s18, 3
      %p55 = por %p53, %p54
      %p57 = scmp.ne.s32.totalorder %s40, %s56
      %p58 = scmp.eq.s32.totalorder %s18, 0
      %p59 = por %p57, %p58
      %s61 = sadd.s32 %s60, 1
      %p64 = scmp.eq.s32.totalorder %s12, 3
      %p65 = scmp.ne.s32.totalorder %s60, %s62
      %p66 = scmp.eq.s32.totalorder %s12, 0
      %p67 = por %p65, %p66
      %p68 = scmp.ne.s32.totalorder %s60, %s62
      %p69 = scmp.eq.s32.totalorder %s17, 3
      %p70 = por %p68, %p69
      %p71 = scmp.ne.s32.totalorder %s62, %s63
      %p72 = scmp.eq.s32.totalorder %s17, 0
      %p73 = por %p71, %p72
      %p74 = scmp.ne.s32.totalorder %s62, %s63
      %p75 = scmp.eq.s32.totalorder %s18, 3
      %p76 = por %p74, %p75
      %p78 = scmp.ne.s32.totalorder %s63, %s77
      %p79 = scmp.eq.s32.totalorder %s18, 0
      %p80 = por %p78, %p79
      %s81 = ssub.s32 %s19, %s31
      %s82 = ssub.s32 %s20, %s27
      %s83 = sor.u32 %s81, %s82
      %p84 = scmp.eq.s32.totalorder %s83, 0
      %s86 = sadd.s32 %s85, 1
      %s87 = scalar_select %p84, %s85, %s86
      %p90 = pneg %p84
      %p91 = scmp.eq.s32.totalorder %s12, 3
      %p92 = por %p90, %p91
      %p93 = scmp.ne.s32.totalorder %s85, %s88
      %p94 = scmp.eq.s32.totalorder %s12, 0
      %p95 = por %p93, %p94
      %p96 = scmp.ne.s32.totalorder %s85, %s88
      %p97 = scmp.eq.s32.totalorder %s17, 3
      %p98 = por %p96, %p97
      %p99 = scmp.ne.s32.totalorder %s88, %s89
      %p100 = scmp.eq.s32.totalorder %s17, 0
      %p101 = por %p99, %p100
      %p102 = scmp.ne.s32.totalorder %s88, %s89
      %p103 = scmp.eq.s32.totalorder %s18, 3
      %p104 = por %p102, %p103
      %p106 = scmp.ne.s32.totalorder %s89, %s105
      %p107 = scmp.eq.s32.totalorder %s18, 0
      %p108 = por %p106, %p107
      %p109 = scmp.le.s32.totalorder 1, %s12
      %p110 = scmp.lt.s32.totalorder %s12, 5
      %p111 = pnand %p109, %p110
      %p112 = pneg %p111
      // Predicated region
      $region9: #{tpu_custom_call.1} parent=5 // pred_check
        _
      $region10: #{tpu_custom_call.1} parent=5 // pred_check_branch
        %114 = sbr.rel (%p111) target = $region12
      $region11: #{tpu_custom_call.1} parent=5 // pred_region
        %s115 = ssub.s32 %s12, 1
        // Predicated region
        $region13: #{tpu_custom_call.1} parent=11 // pred_check
          %p116 = pneg %p73
        $region14: #{tpu_custom_call.1} parent=11 // pred_check_branch
          %118 = sbr.rel (%p116) target = $region16
        $region15: #{tpu_custom_call.1} parent=11 // pred_region
          %s120 = ssub.s32 64, 64
          %121 = vsyncadd [#allocation5], %s120
          %s123 = sshll.u32 [#allocation4], 4
          %s124 = int_to_ptr.vmem [resolvable:$true] %s123
          %126 = dma.hbm_to_vmem [thread:$0]  %s1, 64, %s124, [#allocation5]
        $region16: #{tpu_custom_call.1} parent=11 // pred_fallthru
          _
      $region12: #{tpu_custom_call.1} parent=5 // pred_fallthru
        _
      %p127 = scmp.lt.s32.totalorder %s12, 4
      // Predicated region
      $region17: #{tpu_custom_call.1} parent=5 // pred_check
        %p128 = pneg %p127
      $region18: #{tpu_custom_call.1} parent=5 // pred_check_branch
        %130 = sbr.rel (%p128) target = $region20
      $region19: #{tpu_custom_call.1} parent=5 // pred_region
        // Predicated region
        $region21: #{tpu_custom_call.1} parent=19 // pred_check
          %p131 = pneg %p46
        $region22: #{tpu_custom_call.1} parent=19 // pred_check_branch
          %133 = sbr.rel (%p131) target = $region24
        $region23: #{tpu_custom_call.1} parent=19 // pred_region
          %s134 = sand.u32 %s36, 1
          %s135 = scalar_lea.sflag [#allocation3], %s134
          %s136 = sand.u32 %s36, 1
          %s137 = smul.addr %s136, 4
          %s138 = scalar_lea.vmem [#allocation2], %s137
          %s140 = ssub.s32 64, 64
          %141 = vsyncadd %s135, %s140
          %s142 = smul.addr %s19, 2
          %s143 = sadd.s32 %s20, %s142
          %s144 = smul.addr %s143, 64
          %s145 = scalar_lea.hbm %s0, %s144
          %s147 = sshll.u32 %s138, 4
          %s148 = int_to_ptr.vmem [resolvable:$true] %s147
          %150 = dma.hbm_to_vmem [thread:$0]  %s145, 64, %s148, %s135
        $region24: #{tpu_custom_call.1} parent=19 // pred_fallthru
          _
      $region20: #{tpu_custom_call.1} parent=5 // pred_fallthru
        _
      %p151 = scmp.le.s32.totalorder 1, %s12
      %p152 = scmp.lt.s32.totalorder %s12, 5
      %p153 = pnand %p151, %p152
      %p154 = pneg %p153
      // Predicated region
      $region25: #{tpu_custom_call.1} parent=5 // pred_check
        _
      $region26: #{tpu_custom_call.1} parent=5 // pred_check_branch
        %156 = sbr.rel (%p153) target = $region28
      $region27: #{tpu_custom_call.1} parent=5 // pred_region
        %s157 = ssub.s32 %s12, 1
        %s158 = sand.u32 %s39, 1
        %s159 = scalar_lea.sflag [#allocation3], %s158
        %s160 = sand.u32 %s39, 1
        %s161 = smul.addr %s160, 4
        %s162 = scalar_lea.vmem [#allocation2], %s161
        // Predicated region
        $region29: #{tpu_custom_call.1} parent=27 // pred_check
          %p163 = pneg %p52
        $region30: #{tpu_custom_call.1} parent=27 // pred_check_branch
          %165 = sbr.rel (%p163) target = $region32
        $region31: #{tpu_custom_call.1} parent=27 // pred_region
          %166 = dma.done %s159, 64
        $region32: #{tpu_custom_call.1} parent=27 // pred_fallthru
          _
        // Predicated region
        $region33: #{tpu_custom_call.1} parent=27 // pred_check
          %p167 = pneg %p73
        $region34: #{tpu_custom_call.1} parent=27 // pred_check_branch
          %169 = sbr.rel (%p167) target = $region36
        $region35: #{tpu_custom_call.1} parent=27 // pred_region
          %170 = dma.done [#allocation5], 64
        $region36: #{tpu_custom_call.1} parent=27 // pred_fallthru
          _
        %s171 = sand.u32 %s39, 1
        %s172 = scalar_lea.sflag [#allocation3], %s171
        %s173 = sand.u32 %s39, 1
        %s174 = smul.addr %s173, 4
        %s175 = scalar_lea.vmem [#allocation2], %s174
        %p176 = pneg %p52
        %p177 = pneg %p49
        %p178 = pneg %p73
        %p179 = pneg %p70
        %p180 = pneg %p101
        %p181 = pneg %p98
        %s182 = smul.u32 16, %s22
        %p183 = scmp.lt.s32.totalorder %s21, 1
        %s184 = scalar_select %p183, %s21, 1
        %p185 = scmp.lt.s32.totalorder %s182, 31
        %s186 = scalar_select %p185, %s182, 31
        %s187 = smul.addr %s184, 32
        %s188 = sadd.s32 %s186, %s187
        %s189 = smul.addr %s188, 8
        %s190 = scalar_lea.vmem %s2, %s189
        %s191 = smul.u32 16, %s22
        %p192 = scmp.lt.s32.totalorder %s21, 1
        %s193 = scalar_select %p192, %s21, 1
        %p194 = scmp.lt.s32.totalorder %s191, 31
        %s195 = scalar_select %p194, %s191, 31
        %s196 = smul.addr %s193, 32
        %s197 = sadd.s32 %s195, %s196
        %s198 = smul.addr %s197, 8
        %s199 = scalar_lea.vmem %s2, %s198
        %s200 = smul.u32 16, %s22
        %v201 = vld [vmem:[%s162] sm:$0xf]
        %v202 = vld [vmem:[#allocation4] sm:$0xf]
        %203 = vxpose.xlu0.b32.start [1/16] %v201, 128
        %204 = vxpose.xlu0.b32.cont [2/16] 0.0, 128
        %205 = vxpose.xlu0.b32.cont [3/16] 0.0, 128
        %206 = vxpose.xlu0.b32.cont [4/16] 0.0, 128
        %207 = vxpose.xlu0.b32.cont [5/16] 0.0, 128
        %208 = vxpose.xlu0.b32.cont [6/16] 0.0, 128
        %209 = vxpose.xlu0.b32.cont [7/16] 0.0, 128
        %210 = vxpose.xlu0.b32.cont [8/16] 0.0, 128
        %211 = vxpose.xlu0.b32.cont [9/16] 0.0, 128
        %212 = vxpose.xlu0.b32.cont [10/16] 0.0, 128
        %213 = vxpose.xlu0.b32.cont [11/16] 0.0, 128
        %214 = vxpose.xlu0.b32.cont [12/16] 0.0, 128
        %215 = vxpose.xlu0.b32.cont [13/16] 0.0, 128
        %216 = vxpose.xlu0.b32.cont [14/16] 0.0, 128
        %217 = vxpose.xlu0.b32.cont [15/16] 0.0, 128
        %218 = vxpose.xlu0.b32.end [16/16] 0.0, 128
        %v219 = vpop.trf.xlu0
        %v220 = vpop.trf.xlu0
        %v221 = vpop.trf.xlu0
        %v222 = vpop.trf.xlu0
        %v223 = vpop.trf.xlu0
        %v224 = vpop.trf.xlu0
        %v225 = vpop.trf.xlu0
        %v226 = vpop.trf.xlu0
        %v227 = vpop.trf.xlu0
        %v228 = vpop.trf.xlu0
        %v229 = vpop.trf.xlu0
        %v230 = vpop.trf.xlu0
        %v231 = vpop.trf.xlu0
        %v232 = vpop.trf.xlu0
        %v233 = vpop.trf.xlu0
        %v234 = vpop.trf.xlu0
        %vm235 = vcmask 31744
        %v237 = vsel %vm235, %v219, 0
        %v240 = vsel %vm235, %v220, 0
        %v243 = vsel %vm235, %v221, 0
        %v246 = vsel %vm235, %v222, 0
        %v249 = vsel %vm235, %v223, 0
        %v252 = vsel %vm235, %v224, 0
        %v255 = vsel %vm235, %v225, 0
        %v258 = vsel %vm235, %v226, 0
        %v261 = vsel %vm235, %v227, 0
        %v264 = vsel %vm235, %v228, 0
        %v267 = vsel %vm235, %v229, 0
        %v270 = vsel %vm235, %v230, 0
        %v273 = vsel %vm235, %v231, 0
        %v276 = vsel %vm235, %v232, 0
        %v279 = vsel %vm235, %v233, 0
        %v282 = vsel %vm235, %v234, 0
        %vm284 = vcmask 1043456
        %v286 = vsel %vm284, %v202, 0
        %288 = vmatprep.subr.mxu0 0.0
        %289 = vmatpush1.msra.mxu0 0.0
        %290 = vmatprep.subr.mxu0 0.0
        %291 = vmatpush1.msra.mxu0 0.0
        %292 = vmatprep.subr.mxu0 0.0
        %293 = vmatpush1.msra.mxu0 0.0
        %294 = vmatprep.subr.mxu0 0.0
        %295 = vmatpush1.msra.mxu0 0.0
        %296 = vmatprep.subr.mxu0 0.0
        %297 = vmatpush1.msra.mxu0 0.0
        %298 = vmatprep.subr.mxu0 0.0
        %299 = vmatpush1.msra.mxu0 0.0
        %300 = vmatprep.subr.mxu0 0.0
        %301 = vmatpush1.msra.mxu0 0.0
        %302 = vmatprep.subr.mxu0 0.0
        %303 = vmatpush1.msra.mxu0 0.0
        %304 = vmatprep.subr.mxu0 0.0
        %305 = vmatpush1.msra.mxu0 0.0
        %306 = vmatprep.subr.mxu0 0.0
        %307 = vmatpush1.msra.mxu0 0.0
        %308 = vmatprep.subr.mxu0 0.0
        %309 = vmatpush1.msra.mxu0 0.0
        %310 = vmatprep.subr.mxu0 0.0
        %311 = vmatpush1.msra.mxu0 0.0
        %312 = vmatprep.subr.mxu0 0.0
        %313 = vmatpush1.msra.mxu0 0.0
        %314 = vmatprep.subr.mxu0 0.0
        %315 = vmatpush1.msra.mxu0 0.0
        %316 = vmatprep.subr.mxu0 0.0
        %317 = vmatpush1.msra.mxu0 0.0
        %318 = vmatprep.subr.mxu0 0.0
        %319 = vmatpush1.msra.mxu0 %v286
        %320 = vmatprep.subr.mxu0 0.0
        %321 = vmatpush2.msra.mxu0 0.0
        %322 = vmatprep.subr.mxu0 0.0
        %323 = vmatpush2.msra.mxu0 0.0
        %324 = vmatprep.subr.mxu0 0.0
        %325 = vmatpush2.msra.mxu0 0.0
        %326 = vmatprep.subr.mxu0 0.0
        %327 = vmatpush2.msra.mxu0 0.0
        %328 = vmatprep.subr.mxu0 0.0
        %329 = vmatpush2.msra.mxu0 0.0
        %330 = vmatprep.subr.mxu0 0.0
        %331 = vmatpush2.msra.mxu0 0.0
        %332 = vmatprep.subr.mxu0 0.0
        %333 = vmatpush2.msra.mxu0 0.0
        %334 = vmatprep.subr.mxu0 0.0
        %335 = vmatpush2.msra.mxu0 0.0
        %336 = vmatprep.subr.mxu0 0.0
        %337 = vmatpush2.msra.mxu0 0.0
        %338 = vmatprep.subr.mxu0 0.0
        %339 = vmatpush2.msra.mxu0 0.0
        %340 = vmatprep.subr.mxu0 0.0
        %341 = vmatpush2.msra.mxu0 0.0
        %342 = vmatprep.subr.mxu0 0.0
        %343 = vmatpush2.msra.mxu0 0.0
        %344 = vmatprep.subr.mxu0 0.0
        %345 = vmatpush2.msra.mxu0 0.0
        %346 = vmatprep.subr.mxu0 0.0
        %347 = vmatpush2.msra.mxu0 0.0
        %348 = vmatprep.subr.mxu0 0.0
        %349 = vmatpush2.msra.mxu0 0.0
        %350 = vmatprep.subr.mxu0 0.0
        %351 = vmatpush2.msra.mxu0 0.0
        %352 = vmatprep.mubr.f32.mxu0 0.0
        %353 = vmatmul.mubr.f32.gmra.mxu0 %v237
        %v354 = vpop.f32.mrf.mxu0
        %v355 = vadd.f32 0.0, %v354
        %v356 = vpop.f32.mrf.mxu0
        %357 = vmatprep.mubr.f32.mxu0 0.0
        %358 = vmatmul.mubr.f32.gmra.mxu0 %v240
        %v359 = vpop.f32.mrf.mxu0
        %v360 = vadd.f32 0.0, %v359
        %v361 = vpop.f32.mrf.mxu0
        %362 = vmatprep.mubr.f32.mxu0 0.0
        %363 = vmatmul.mubr.f32.gmra.mxu0 %v243
        %v364 = vpop.f32.mrf.mxu0
        %v365 = vadd.f32 0.0, %v364
        %v366 = vpop.f32.mrf.mxu0
        %367 = vmatprep.mubr.f32.mxu0 0.0
        %368 = vmatmul.mubr.f32.gmra.mxu0 %v246
        %v369 = vpop.f32.mrf.mxu0
        %v370 = vadd.f32 0.0, %v369
        %v371 = vpop.f32.mrf.mxu0
        %372 = vmatprep.mubr.f32.mxu0 0.0
        %373 = vmatmul.mubr.f32.gmra.mxu0 %v249
        %v374 = vpop.f32.mrf.mxu0
        %v375 = vadd.f32 0.0, %v374
        %v376 = vpop.f32.mrf.mxu0
        %377 = vmatprep.mubr.f32.mxu0 0.0
        %378 = vmatmul.mubr.f32.gmra.mxu0 %v252
        %v379 = vpop.f32.mrf.mxu0
        %v380 = vadd.f32 0.0, %v379
        %v381 = vpop.f32.mrf.mxu0
        %382 = vmatprep.mubr.f32.mxu0 0.0
        %383 = vmatmul.mubr.f32.gmra.mxu0 %v255
        %v384 = vpop.f32.mrf.mxu0
        %v385 = vadd.f32 0.0, %v384
        %v386 = vpop.f32.mrf.mxu0
        %387 = vmatprep.mubr.f32.mxu0 0.0
        %388 = vmatmul.mubr.f32.gmra.mxu0 %v258
        %v389 = vpop.f32.mrf.mxu0
        %v390 = vadd.f32 0.0, %v389
        %v391 = vpop.f32.mrf.mxu0
        %392 = vmatprep.mubr.f32.mxu0 0.0
        %393 = vmatmul.mubr.f32.gmra.mxu0 %v261
        %v394 = vpop.f32.mrf.mxu0
        %v395 = vadd.f32 0.0, %v394
        %v396 = vpop.f32.mrf.mxu0
        %397 = vmatprep.mubr.f32.mxu0 0.0
        %398 = vmatmul.mubr.f32.gmra.mxu0 %v264
        %v399 = vpop.f32.mrf.mxu0
        %v400 = vadd.f32 0.0, %v399
        %v401 = vpop.f32.mrf.mxu0
        %402 = vmatprep.mubr.f32.mxu0 0.0
        %403 = vmatmul.mubr.f32.gmra.mxu0 %v267
        %v404 = vpop.f32.mrf.mxu0
        %v405 = vadd.f32 0.0, %v404
        %v406 = vpop.f32.mrf.mxu0
        %407 = vmatprep.mubr.f32.mxu0 0.0
        %408 = vmatmul.mubr.f32.gmra.mxu0 %v270
        %v409 = vpop.f32.mrf.mxu0
        %v410 = vadd.f32 0.0, %v409
        %v411 = vpop.f32.mrf.mxu0
        %412 = vmatprep.mubr.f32.mxu0 0.0
        %413 = vmatmul.mubr.f32.gmra.mxu0 %v273
        %v414 = vpop.f32.mrf.mxu0
        %v415 = vadd.f32 0.0, %v414
        %v416 = vpop.f32.mrf.mxu0
        %417 = vmatprep.mubr.f32.mxu0 0.0
        %418 = vmatmul.mubr.f32.gmra.mxu0 %v276
        %v419 = vpop.f32.mrf.mxu0
        %v420 = vadd.f32 0.0, %v419
        %v421 = vpop.f32.mrf.mxu0
        %422 = vmatprep.mubr.f32.mxu0 0.0
        %423 = vmatmul.mubr.f32.gmra.mxu0 %v279
        %v424 = vpop.f32.mrf.mxu0
        %v425 = vadd.f32 0.0, %v424
        %v426 = vpop.f32.mrf.mxu0
        %427 = vmatprep.mubr.f32.mxu0 0.0
        %428 = vmatmul.mubr.f32.gmra.mxu0 %v282
        %v429 = vpop.f32.mrf.mxu0
        %v430 = vadd.f32 0.0, %v429
        %v431 = vpop.f32.mrf.mxu0
        %432 = vdwg.mxu0
        %vm433 = vcmask 64512
        %434 = vst.msk [vmem:[%s199] sm:$0xff] %vm433, %v355
        %435 = vst.msk [vmem:[%s199 + $0x8] sm:$0xff] %vm433, %v360
        %436 = vst.msk [vmem:[%s199 + $0x10] sm:$0xff] %vm433, %v365
        %437 = vst.msk [vmem:[%s199 + $0x18] sm:$0xff] %vm433, %v370
        %438 = vst.msk [vmem:[%s199 + $0x20] sm:$0xff] %vm433, %v375
        %439 = vst.msk [vmem:[%s199 + $0x28] sm:$0xff] %vm433, %v380
        %440 = vst.msk [vmem:[%s199 + $0x30] sm:$0xff] %vm433, %v385
        %441 = vst.msk [vmem:[%s199 + $0x38] sm:$0xff] %vm433, %v390
        %442 = vst.msk [vmem:[%s199 + $0x40] sm:$0xff] %vm433, %v395
        %443 = vst.msk [vmem:[%s199 + $0x48] sm:$0xff] %vm433, %v400
        %444 = vst.msk [vmem:[%s199 + $0x50] sm:$0xff] %vm433, %v405
        %445 = vst.msk [vmem:[%s199 + $0x58] sm:$0xff] %vm433, %v410
        %446 = vst.msk [vmem:[%s199 + $0x60] sm:$0xff] %vm433, %v415
        %447 = vst.msk [vmem:[%s199 + $0x68] sm:$0xff] %vm433, %v420
        %448 = vst.msk [vmem:[%s199 + $0x70] sm:$0xff] %vm433, %v425
        %449 = vst.msk [vmem:[%s199 + $0x78] sm:$0xff] %vm433, %v430
        %s450 = smul.u32 16, %s22
        %p451 = scmp.lt.s32.totalorder %s21, 1
        %s452 = scalar_select %p451, %s21, 1
        %p453 = scmp.lt.s32.totalorder %s450, 31
        %s454 = scalar_select %p453, %s450, 31
        %s455 = smul.addr %s452, 32
        %s456 = sadd.s32 %s454, %s455
        %s457 = smul.addr %s456, 8
        %s458 = scalar_lea.vmem %s2, %s457
        // Predicated region
        $region37: #{tpu_custom_call.1} parent=27 // pred_check
          %p459 = pneg %p98
        $region38: #{tpu_custom_call.1} parent=27 // pred_check_branch
          %461 = sbr.rel (%p459) target = $region40
        $region39: #{tpu_custom_call.1} parent=27 // pred_region
          %s462 = smul.u32 16, %s22
        $region40: #{tpu_custom_call.1} parent=27 // pred_fallthru
          _
      $region28: #{tpu_custom_call.1} parent=5 // pred_fallthru
        _
      %p463 = scmp.le.s32.totalorder 2, %s12
      // Predicated region
      $region41: #{tpu_custom_call.1} parent=5 // pred_check
        %p464 = pneg %p463
      $region42: #{tpu_custom_call.1} parent=5 // pred_check_branch
        %466 = sbr.rel (%p464) target = $region44
      $region43: #{tpu_custom_call.1} parent=5 // pred_region
        %s467 = ssub.s32 %s12, 2
        // Predicated region
        $region45: #{tpu_custom_call.1} parent=43 // pred_check
          %p468 = pneg %p104
        $region46: #{tpu_custom_call.1} parent=43 // pred_check_branch
          %470 = sbr.rel (%p468) target = $region48
        $region47: #{tpu_custom_call.1} parent=43 // pred_region
          %s471 = smul.u32 16, %s24
          %p472 = scmp.lt.s32.totalorder %s23, 1
          %s473 = scalar_select %p472, %s23, 1
          %p474 = scmp.lt.s32.totalorder %s471, 31
          %s475 = scalar_select %p474, %s471, 31
          %s476 = smul.addr %s473, 32
          %s477 = sadd.s32 %s475, %s476
          %s478 = smul.addr %s477, 8
          %s479 = scalar_lea.vmem %s2, %s478
        $region48: #{tpu_custom_call.1} parent=43 // pred_fallthru
          _
      $region44: #{tpu_custom_call.1} parent=5 // pred_fallthru
        _
    $region6: #{tpu_custom_call.1} parent=1 // loop_footer
      %s16 = sadd.s32 1, %s12
    $region7: #{tpu_custom_call.1} parent=1 // loop_footer_branch
      %11 = sbr.rel target = $region3
    $region8: #{tpu_custom_call.1} parent=1 // loop_exit
      _
    %480 = vsyncpa [#allocation3], 1
    %s481 = scalar_lea.sflag [#allocation3], 1
    %482 = vsyncpa %s481, 1
    %483 = vsyncpa [#allocation5], 1

</llo_original>
